<compile_context>
chip_gen: v5e
topology: v5e:2x2
jax: 0.10.0
libtpu: 0.0.40
codegen_flags: <defaults>
</compile_context>

<pallas_src>
import math
from functools import partial

import jax
import jax.numpy as jnp
from jax.experimental import pallas as pl
from jax.experimental.pallas import tpu as pltpu


def _pma_kernel(num_heads, dim, bt, s_pad, n_pad,
                q_ref, x_ref, bias_ref, wkv_ref, bkv_ref, wo_ref, bo_ref,
                o_ref, heads_ref):
    """One batch tile (bt elements) per grid step.

    q_ref    : (bt*s_pad, D) bf16   pre-tiled seed-query projection (grid-invariant)
    x_ref    : (bt*n_pad, D) bf16   bt flattened set elements
    bias_ref : (bt*s_pad, bt*n_pad) bf16 additive mask: 0 inside a batch block / valid
                                    key, -1e30 across batches or on padded key rows
    wkv_ref  : (D, 2D) bf16  (K half pre-scaled by 1/sqrt(D)),  bkv_ref: (1, 2D) f32
    wo_ref   : (D, D) bf16,  bo_ref: (1, D) f32
    o_ref    : (bt*s_pad, D) f32
    heads_ref: (bt*s_pad, D) f32 VMEM scratch (per-head outputs, no lane concat)
    """
    ds = dim // num_heads

    # Fused K/V projection for the whole batch tile: one bf16 MXU matmul, f32 acc.
    kv = jnp.dot(x_ref[...], wkv_ref[...],
                 preferred_element_type=jnp.float32) + bkv_ref[...]    # (bt*n_pad, 2D)

    q_bf = q_ref[...]                                                  # (bt*s_pad, D) bf16
    bias = bias_ref[...].astype(jnp.float32)                           # (bt*s_pad, bt*n_pad)

    for h in range(num_heads):              # static unroll over heads (H is small)
        lo = h * ds
        qh = q_bf[:, lo:lo + ds]                                       # (bt*s_pad, ds)
        kh = kv[:, lo:lo + ds].astype(jnp.bfloat16)                    # (bt*n_pad, ds)
        vh = kv[:, dim + lo:dim + lo + ds].astype(jnp.bfloat16)        # (bt*n_pad, ds)

        # 1/sqrt(dim) is already folded into wk/bk on the host; the additive mask
        # pushes cross-batch / padded-key logits to -inf, so the dense 2-D softmax
        # is exactly per-batch-element.
        logits = jax.lax.dot_general(
            qh, kh, (((1,), (1,)), ((), ())),
            preferred_element_type=jnp.float32) + bias                 # (bt*s_pad, bt*n_pad)

        m = jnp.max(logits, axis=-1, keepdims=True)
        p = jnp.exp(logits - m)
        denom = jnp.sum(p, axis=-1, keepdims=True)
        p = p * pl.reciprocal(denom, approx=True)                      # EUP slot

        # Write this head's A @ V_h straight into its column slice (no lane concat).
        heads_ref[:, lo:lo + ds] = jnp.dot(
            p.astype(jnp.bfloat16), vh, preferred_element_type=jnp.float32)

    # O = Q_ + A @ V_ per head (heads concatenated along features via the scratch).
    o = q_bf.astype(jnp.float32) + heads_ref[...]                      # (bt*s_pad, D)

    # O = O + relu(fc_o(O)) — one dense bf16 MXU matmul over all bt*s_pad rows.
    fc = jnp.dot(o.astype(jnp.bfloat16), wo_ref[...],
                 preferred_element_type=jnp.float32) + bo_ref[...]
    o_ref[...] = (o + jnp.maximum(fc, 0.0)).astype(o_ref.dtype)


def pma_forward(X, params, num_heads, block_b=None):
    B, N, D = X.shape
    S_seed = params["S"]
    S = S_seed.shape[0]
    assert D % num_heads == 0

    # ---- host-side prep (plain XLA, done once) ----
    scale = 1.0 / math.sqrt(D)                         # reference scales by sqrt(dim_V)
    q = S_seed @ params["wq"] + params["bq"]                              # (S, D)
    # Fold the attention scale into the K half of the fused weights (NOT into q —
    # q is reused unscaled as the residual).
    wkv = jnp.concatenate([params["wk"] * scale, params["wv"]], axis=1)   # (D, 2D)
    bkv = jnp.concatenate([params["bk"] * scale, params["bv"]], axis=1)   # (1, 2D)

    def rup(v, m):
        return (v + m - 1) // m * m

    s_pad = rup(S, 8)
    n_pad = rup(N, 16)          # 16: bf16 sublane packing of the X tile

    # Batch tile: target bt*n_pad ≈ 128–256 lanes (lane-dense logits/softmax and a
    # bounded bt^2 softmax blow-up), capped so that b_pad // bt >= 2 whenever B >= 2
    # (keeps both v7x TensorCores busy under dimension_semantics=("parallel",)).
    if block_b is None:
        cap = max(1, (B + 1) // 2)
        hi = max(1, min(cap, max(1, 256 // n_pad)))
        block_b = hi
        for cand in range(hi, 0, -1):                  # prefer a 128-aligned lane dim
            if (cand * n_pad) % 128 == 0:
                block_b = cand
                break
    bt = block_b
    b_pad = rup(B, bt)
    n_steps = b_pad // bt

    # Pre-tiled, grid-invariant query projection (bf16 MXU operand / f32-cast residual).
    q_p = jnp.pad(q, ((0, s_pad - S), (0, 0)))
    q_tiled = jnp.tile(q_p, (bt, 1)).astype(jnp.bfloat16)                 # (bt*s_pad, D)

    x_p = jnp.pad(X, ((0, b_pad - B), (0, n_pad - N), (0, 0)))
    x_flat = x_p.reshape(b_pad * n_pad, D).astype(jnp.bfloat16)

    # Additive attention mask for one tile: block-diagonal over the bt batch
    # elements plus masking of the padded key rows.  Stored bf16, cast to f32 in-kernel.
    row_b = jnp.repeat(jnp.arange(bt), s_pad)                             # (bt*s_pad,)
    col_b = jnp.repeat(jnp.arange(bt), n_pad)                             # (bt*n_pad,)
    col_n = jnp.tile(jnp.arange(n_pad), bt)                               # (bt*n_pad,)
    valid = (row_b[:, None] == col_b[None, :]) & (col_n[None, :] < N)
    bias = jnp.where(valid, 0.0, -1e30).astype(jnp.bfloat16)

    wkv_bf = wkv.astype(jnp.bfloat16)
    wo_bf = params["wo"].astype(jnp.bfloat16)
    bkv_f = bkv.astype(jnp.float32)
    bo_f = params["bo"].astype(jnp.float32)

    kernel = partial(_pma_kernel, num_heads, D, bt, s_pad, n_pad)

    def const(shape):
        return pl.BlockSpec(shape, lambda b: tuple(0 for _ in shape))

    out_flat = pl.pallas_call(
        kernel,
        out_shape=jax.ShapeDtypeStruct((b_pad * s_pad, D), jnp.float32),
        grid=(n_steps,),
        in_specs=[
            const((bt * s_pad, D)),                              # q (pre-tiled, shared)
            pl.BlockSpec((bt * n_pad, D), lambda b: (b, 0)),     # X tile (flattened)
            const((bt * s_pad, bt * n_pad)),                     # additive mask (bf16)
            const((D, 2 * D)), const((1, 2 * D)),                # Wkv (bf16), bkv (f32)
            const((D, D)), const((1, D)),                        # Wo (bf16),  bo (f32)
        ],
        out_specs=pl.BlockSpec((bt * s_pad, D), lambda b: (b, 0)),
        scratch_shapes=[pltpu.VMEM((bt * s_pad, D), jnp.float32)],
        compiler_params=pltpu.CompilerParams(
            dimension_semantics=("parallel",)),
    )(q_tiled, x_flat, bias, wkv_bf, bkv_f, wo_bf, bo_f)

    return out_flat.reshape(b_pad, s_pad, D)[:B, :S]


def pma_ref(X, params, num_heads):
    """Pure-JAX f32 reference mirroring the PyTorch MAB/PMA forward exactly."""
    B, N, D = X.shape
    S_seed = params["S"]
    Q = jnp.broadcast_to(S_seed[None], (B,) + S_seed.shape)   # S.repeat(B,1,1)
    Q = Q @ params["wq"] + params["bq"]
    K = X @ params["wk"] + params["bk"]
    V = X @ params["wv"] + params["bv"]
    Q_ = jnp.concatenate(jnp.split(Q, num_heads, axis=2), axis=0)
    K_ = jnp.concatenate(jnp.split(K, num_heads, axis=2), axis=0)
    V_ = jnp.concatenate(jnp.split(V, num_heads, axis=2), axis=0)
    A = jax.nn.softmax(Q_ @ jnp.swapaxes(K_, 1, 2) / math.sqrt(D), axis=2)
    O = jnp.concatenate(jnp.split(Q_ + A @ V_, num_heads, axis=0), axis=2)
    O = O + jax.nn.relu(O @ params["wo"] + params["bo"])
    return O


def init_params(key, dim, num_seeds):
    """Deterministic synthetic init (xavier-uniform seeds, Linear-style weights)."""
    ks = jax.random.split(key, 9)
    xav = math.sqrt(6.0 / (num_seeds + dim))
    bnd = 1.0 / math.sqrt(dim)
    u = lambda k, shape, b: jax.random.uniform(k, shape, jnp.float32, -b, b)
    return {
        "S":  u(ks[0], (num_seeds, dim), xav),
        "wq": u(ks[1], (dim, dim), bnd), "bq": u(ks[2], (1, dim), bnd),
        "wk": u(ks[3], (dim, dim), bnd), "bk": u(ks[4], (1, dim), bnd),
        "wv": u(ks[5], (dim, dim), bnd), "bv": u(ks[6], (1, dim), bnd),
        "wo": u(ks[7], (dim, dim), bnd), "bo": u(ks[8], (1, dim), bnd),
    }


if __name__ == "__main__":
    B, N, dim = 2, 8, 32
    num_heads, num_seeds = 4, 4

    key = jax.random.PRNGKey(0)
    k_param, k_x = jax.random.split(key)
    params = init_params(k_param, dim, num_seeds)
    X = jax.random.normal(k_x, (B, N, dim), dtype=jnp.float32)

    out = pma_forward(X, params, num_heads)
    out = jax.block_until_ready(out)

    ref = pma_ref(X, params, num_heads)
    assert out.shape == (B, num_seeds, dim)
    # Tolerance accounts for bf16 MXU operands and the approximate (EUP) reciprocal.
    assert jnp.allclose(out, ref, atol=2e-2, rtol=2e-2), "mismatch vs reference"

    # TODO(synk): optional LayerNorm branch (ln=True) of MAB is not implemented
    # (the PMA default used here is ln=False).
    print("KERNEL_OK")
</pallas_src>

<mosaic_0001>
module attributes {stable_mosaic.version = 11 : i64} {
  func.func @_pma_kernel(%arg0: i32, %arg1: memref<8x32xbf16, #tpu.memory_space<vmem>>, %arg2: memref<16x32xbf16, #tpu.memory_space<vmem>>, %arg3: memref<8x16xbf16, #tpu.memory_space<vmem>>, %arg4: memref<32x64xbf16, #tpu.memory_space<vmem>>, %arg5: memref<1x64xf32, #tpu.memory_space<vmem>>, %arg6: memref<32x32xbf16, #tpu.memory_space<vmem>>, %arg7: memref<1x32xf32, #tpu.memory_space<vmem>>, %arg8: memref<8x32xf32, #tpu.memory_space<vmem>>, %arg9: memref<8x32xf32, #tpu.memory_space<vmem>>) attributes {dimension_semantics = [#tpu.dimension_semantics<parallel>], iteration_bounds = array<i64: 2>, scalar_prefetch = 0 : i64, scratch_operands = 1 : i64, tpu.core_type = #tpu.core_type<tc>, window_params = [{pipeline_mode = #tpu.pipeline_mode<synchronous>, transform_indices = @transform_0, window_bounds = array<i64: 8, 32>}, {transform_indices = @transform_1, window_bounds = array<i64: 16, 32>}, {pipeline_mode = #tpu.pipeline_mode<synchronous>, transform_indices = @transform_2, window_bounds = array<i64: 8, 16>}, {pipeline_mode = #tpu.pipeline_mode<synchronous>, transform_indices = @transform_3, window_bounds = array<i64: 32, 64>}, {pipeline_mode = #tpu.pipeline_mode<synchronous>, transform_indices = @transform_4, window_bounds = array<i64: 1, 64>}, {pipeline_mode = #tpu.pipeline_mode<synchronous>, transform_indices = @transform_5, window_bounds = array<i64: 32, 32>}, {pipeline_mode = #tpu.pipeline_mode<synchronous>, transform_indices = @transform_6, window_bounds = array<i64: 1, 32>}, {transform_indices = @transform_7, window_bounds = array<i64: 8, 32>}]} {
    %c0 = arith.constant 0 : index
    %c0_0 = arith.constant 0 : index
    %0 = vector.load %arg2[%c0, %c0_0] : memref<16x32xbf16, #tpu.memory_space<vmem>>, vector<16x32xbf16>
    %c0_1 = arith.constant 0 : index
    %c0_2 = arith.constant 0 : index
    %1 = vector.load %arg4[%c0_1, %c0_2] : memref<32x64xbf16, #tpu.memory_space<vmem>>, vector<32x64xbf16>
    %cst = arith.constant dense<0.000000e+00> : vector<16x64xf32>
    %2 = tpu.matmul %0, %1, %cst {dimension_numbers = #tpu.dot_dimension_numbers<[1], [0], [0], [1], [0, 0, 1, 1], [], []>} : vector<16x32xbf16>, vector<32x64xbf16>, vector<16x64xf32> -> vector<16x64xf32>
    %c0_3 = arith.constant 0 : index
    %c0_4 = arith.constant 0 : index
    %3 = vector.load %arg5[%c0_3, %c0_4] : memref<1x64xf32, #tpu.memory_space<vmem>>, vector<1x64xf32>
    %4 = vector.broadcast %3 : vector<1x64xf32> to vector<16x64xf32>
    %5 = arith.addf %2, %4 : vector<16x64xf32>
    %c0_5 = arith.constant 0 : index
    %c0_6 = arith.constant 0 : index
    %6 = vector.load %arg1[%c0_5, %c0_6] : memref<8x32xbf16, #tpu.memory_space<vmem>>, vector<8x32xbf16>
    %c0_7 = arith.constant 0 : index
    %c0_8 = arith.constant 0 : index
    %7 = vector.load %arg3[%c0_7, %c0_8] : memref<8x16xbf16, #tpu.memory_space<vmem>>, vector<8x16xbf16>
    %8 = arith.extf %7 : vector<8x16xbf16> to vector<8x16xf32>
    %9 = vector.extract_strided_slice %6 {offsets = [0, 0], sizes = [8, 8], strides = [1, 1]} : vector<8x32xbf16> to vector<8x8xbf16>
    %10 = vector.extract_strided_slice %5 {offsets = [0, 0], sizes = [16, 8], strides = [1, 1]} : vector<16x64xf32> to vector<16x8xf32>
    %11 = arith.truncf %10 : vector<16x8xf32> to vector<16x8xbf16>
    %12 = vector.extract_strided_slice %5 {offsets = [0, 32], sizes = [16, 8], strides = [1, 1]} : vector<16x64xf32> to vector<16x8xf32>
    %13 = arith.truncf %12 : vector<16x8xf32> to vector<16x8xbf16>
    %cst_9 = arith.constant dense<0.000000e+00> : vector<8x16xf32>
    %14 = tpu.matmul %9, %11, %cst_9 {dimension_numbers = #tpu.dot_dimension_numbers<[1], [1], [0], [0], [0, 0, 1, 0], [], []>} : vector<8x8xbf16>, vector<16x8xbf16>, vector<8x16xf32> -> vector<8x16xf32>
    %15 = arith.addf %14, %8 : vector<8x16xf32>
    %cst_10 = arith.constant dense<0xFF800000> : vector<8xf32>
    %16 = vector.multi_reduction <maximumf>, %15, %cst_10 [1] : vector<8x16xf32> to vector<8xf32>
    %17 = vector.shape_cast %16 : vector<8xf32> to vector<8x1xf32>
    %18 = vector.broadcast %17 : vector<8x1xf32> to vector<8x16xf32>
    %19 = arith.subf %15, %18 : vector<8x16xf32>
    %20 = math.exp %19 : vector<8x16xf32>
    %cst_11 = arith.constant dense<0.000000e+00> : vector<8xf32>
    %21 = vector.multi_reduction <add>, %20, %cst_11 [1] : vector<8x16xf32> to vector<8xf32>
    %22 = vector.shape_cast %21 : vector<8xf32> to vector<8x1xf32>
    %23 = tpu.reciprocal %22 {approx = true} : vector<8x1xf32> -> vector<8x1xf32>
    %24 = vector.broadcast %23 : vector<8x1xf32> to vector<8x16xf32>
    %25 = arith.mulf %20, %24 : vector<8x16xf32>
    %26 = arith.truncf %25 : vector<8x16xf32> to vector<8x16xbf16>
    %cst_12 = arith.constant dense<0.000000e+00> : vector<8x8xf32>
    %27 = tpu.matmul %26, %13, %cst_12 {dimension_numbers = #tpu.dot_dimension_numbers<[1], [0], [0], [1], [0, 0, 1, 1], [], []>} : vector<8x16xbf16>, vector<16x8xbf16>, vector<8x8xf32> -> vector<8x8xf32>
    %c0_13 = arith.constant 0 : index
    %c0_14 = arith.constant 0 : index
    %28 = vector.load %arg9[%c0_13, %c0_14] : memref<8x32xf32, #tpu.memory_space<vmem>>, vector<8x8xf32>
    tpu.vector_store %arg9[%c0_13, %c0_14], %27 {strides = array<i32>} : memref<8x32xf32, #tpu.memory_space<vmem>>, vector<8x8xf32>,
    %29 = vector.extract_strided_slice %6 {offsets = [0, 8], sizes = [8, 8], strides = [1, 1]} : vector<8x32xbf16> to vector<8x8xbf16>
    %30 = vector.extract_strided_slice %5 {offsets = [0, 8], sizes = [16, 8], strides = [1, 1]} : vector<16x64xf32> to vector<16x8xf32>
    %31 = arith.truncf %30 : vector<16x8xf32> to vector<16x8xbf16>
    %32 = vector.extract_strided_slice %5 {offsets = [0, 40], sizes = [16, 8], strides = [1, 1]} : vector<16x64xf32> to vector<16x8xf32>
    %33 = arith.truncf %32 : vector<16x8xf32> to vector<16x8xbf16>
    %cst_15 = arith.constant dense<0.000000e+00> : vector<8x16xf32>
    %34 = tpu.matmul %29, %31, %cst_15 {dimension_numbers = #tpu.dot_dimension_numbers<[1], [1], [0], [0], [0, 0, 1, 0], [], []>} : vector<8x8xbf16>, vector<16x8xbf16>, vector<8x16xf32> -> vector<8x16xf32>
    %35 = arith.addf %34, %8 : vector<8x16xf32>
    %cst_16 = arith.constant dense<0xFF800000> : vector<8xf32>
    %36 = vector.multi_reduction <maximumf>, %35, %cst_16 [1] : vector<8x16xf32> to vector<8xf32>
    %37 = vector.shape_cast %36 : vector<8xf32> to vector<8x1xf32>
    %38 = vector.broadcast %37 : vector<8x1xf32> to vector<8x16xf32>
    %39 = arith.subf %35, %38 : vector<8x16xf32>
    %40 = math.exp %39 : vector<8x16xf32>
    %cst_17 = arith.constant dense<0.000000e+00> : vector<8xf32>
    %41 = vector.multi_reduction <add>, %40, %cst_17 [1] : vector<8x16xf32> to vector<8xf32>
    %42 = vector.shape_cast %41 : vector<8xf32> to vector<8x1xf32>
    %43 = tpu.reciprocal %42 {approx = true} : vector<8x1xf32> -> vector<8x1xf32>
    %44 = vector.broadcast %43 : vector<8x1xf32> to vector<8x16xf32>
    %45 = arith.mulf %40, %44 : vector<8x16xf32>
    %46 = arith.truncf %45 : vector<8x16xf32> to vector<8x16xbf16>
    %cst_18 = arith.constant dense<0.000000e+00> : vector<8x8xf32>
    %47 = tpu.matmul %46, %33, %cst_18 {dimension_numbers = #tpu.dot_dimension_numbers<[1], [0], [0], [1], [0, 0, 1, 1], [], []>} : vector<8x16xbf16>, vector<16x8xbf16>, vector<8x8xf32> -> vector<8x8xf32>
    %c0_19 = arith.constant 0 : index
    %c8 = arith.constant 8 : index
    %48 = vector.load %arg9[%c0_19, %c8] : memref<8x32xf32, #tpu.memory_space<vmem>>, vector<8x8xf32>
    tpu.vector_store %arg9[%c0_19, %c8], %47 {strides = array<i32>} : memref<8x32xf32, #tpu.memory_space<vmem>>, vector<8x8xf32>,
    %49 = vector.extract_strided_slice %6 {offsets = [0, 16], sizes = [8, 8], strides = [1, 1]} : vector<8x32xbf16> to vector<8x8xbf16>
    %50 = vector.extract_strided_slice %5 {offsets = [0, 16], sizes = [16, 8], strides = [1, 1]} : vector<16x64xf32> to vector<16x8xf32>
    %51 = arith.truncf %50 : vector<16x8xf32> to vector<16x8xbf16>
    %52 = vector.extract_strided_slice %5 {offsets = [0, 48], sizes = [16, 8], strides = [1, 1]} : vector<16x64xf32> to vector<16x8xf32>
    %53 = arith.truncf %52 : vector<16x8xf32> to vector<16x8xbf16>
    %cst_20 = arith.constant dense<0.000000e+00> : vector<8x16xf32>
    %54 = tpu.matmul %49, %51, %cst_20 {dimension_numbers = #tpu.dot_dimension_numbers<[1], [1], [0], [0], [0, 0, 1, 0], [], []>} : vector<8x8xbf16>, vector<16x8xbf16>, vector<8x16xf32> -> vector<8x16xf32>
    %55 = arith.addf %54, %8 : vector<8x16xf32>
    %cst_21 = arith.constant dense<0xFF800000> : vector<8xf32>
    %56 = vector.multi_reduction <maximumf>, %55, %cst_21 [1] : vector<8x16xf32> to vector<8xf32>
    %57 = vector.shape_cast %56 : vector<8xf32> to vector<8x1xf32>
    %58 = vector.broadcast %57 : vector<8x1xf32> to vector<8x16xf32>
    %59 = arith.subf %55, %58 : vector<8x16xf32>
    %60 = math.exp %59 : vector<8x16xf32>
    %cst_22 = arith.constant dense<0.000000e+00> : vector<8xf32>
    %61 = vector.multi_reduction <add>, %60, %cst_22 [1] : vector<8x16xf32> to vector<8xf32>
    %62 = vector.shape_cast %61 : vector<8xf32> to vector<8x1xf32>
    %63 = tpu.reciprocal %62 {approx = true} : vector<8x1xf32> -> vector<8x1xf32>
    %64 = vector.broadcast %63 : vector<8x1xf32> to vector<8x16xf32>
    %65 = arith.mulf %60, %64 : vector<8x16xf32>
    %66 = arith.truncf %65 : vector<8x16xf32> to vector<8x16xbf16>
    %cst_23 = arith.constant dense<0.000000e+00> : vector<8x8xf32>
    %67 = tpu.matmul %66, %53, %cst_23 {dimension_numbers = #tpu.dot_dimension_numbers<[1], [0], [0], [1], [0, 0, 1, 1], [], []>} : vector<8x16xbf16>, vector<16x8xbf16>, vector<8x8xf32> -> vector<8x8xf32>
    %c0_24 = arith.constant 0 : index
    %c16 = arith.constant 16 : index
    %68 = vector.load %arg9[%c0_24, %c16] : memref<8x32xf32, #tpu.memory_space<vmem>>, vector<8x8xf32>
    tpu.vector_store %arg9[%c0_24, %c16], %67 {strides = array<i32>} : memref<8x32xf32, #tpu.memory_space<vmem>>, vector<8x8xf32>,
    %69 = vector.extract_strided_slice %6 {offsets = [0, 24], sizes = [8, 8], strides = [1, 1]} : vector<8x32xbf16> to vector<8x8xbf16>
    %70 = vector.extract_strided_slice %5 {offsets = [0, 24], sizes = [16, 8], strides = [1, 1]} : vector<16x64xf32> to vector<16x8xf32>
    %71 = arith.truncf %70 : vector<16x8xf32> to vector<16x8xbf16>
    %72 = vector.extract_strided_slice %5 {offsets = [0, 56], sizes = [16, 8], strides = [1, 1]} : vector<16x64xf32> to vector<16x8xf32>
    %73 = arith.truncf %72 : vector<16x8xf32> to vector<16x8xbf16>
    %cst_25 = arith.constant dense<0.000000e+00> : vector<8x16xf32>
    %74 = tpu.matmul %69, %71, %cst_25 {dimension_numbers = #tpu.dot_dimension_numbers<[1], [1], [0], [0], [0, 0, 1, 0], [], []>} : vector<8x8xbf16>, vector<16x8xbf16>, vector<8x16xf32> -> vector<8x16xf32>
    %75 = arith.addf %74, %8 : vector<8x16xf32>
    %cst_26 = arith.constant dense<0xFF800000> : vector<8xf32>
    %76 = vector.multi_reduction <maximumf>, %75, %cst_26 [1] : vector<8x16xf32> to vector<8xf32>
    %77 = vector.shape_cast %76 : vector<8xf32> to vector<8x1xf32>
    %78 = vector.broadcast %77 : vector<8x1xf32> to vector<8x16xf32>
    %79 = arith.subf %75, %78 : vector<8x16xf32>
    %80 = math.exp %79 : vector<8x16xf32>
    %cst_27 = arith.constant dense<0.000000e+00> : vector<8xf32>
    %81 = vector.multi_reduction <add>, %80, %cst_27 [1] : vector<8x16xf32> to vector<8xf32>
    %82 = vector.shape_cast %81 : vector<8xf32> to vector<8x1xf32>
    %83 = tpu.reciprocal %82 {approx = true} : vector<8x1xf32> -> vector<8x1xf32>
    %84 = vector.broadcast %83 : vector<8x1xf32> to vector<8x16xf32>
    %85 = arith.mulf %80, %84 : vector<8x16xf32>
    %86 = arith.truncf %85 : vector<8x16xf32> to vector<8x16xbf16>
    %cst_28 = arith.constant dense<0.000000e+00> : vector<8x8xf32>
    %87 = tpu.matmul %86, %73, %cst_28 {dimension_numbers = #tpu.dot_dimension_numbers<[1], [0], [0], [1], [0, 0, 1, 1], [], []>} : vector<8x16xbf16>, vector<16x8xbf16>, vector<8x8xf32> -> vector<8x8xf32>
    %c0_29 = arith.constant 0 : index
    %c24 = arith.constant 24 : index
    %88 = vector.load %arg9[%c0_29, %c24] : memref<8x32xf32, #tpu.memory_space<vmem>>, vector<8x8xf32>
    tpu.vector_store %arg9[%c0_29, %c24], %87 {strides = array<i32>} : memref<8x32xf32, #tpu.memory_space<vmem>>, vector<8x8xf32>,
    %89 = arith.extf %6 : vector<8x32xbf16> to vector<8x32xf32>
    %c0_30 = arith.constant 0 : index
    %c0_31 = arith.constant 0 : index
    %90 = vector.load %arg9[%c0_30, %c0_31] : memref<8x32xf32, #tpu.memory_space<vmem>>, vector<8x32xf32>
    %91 = arith.addf %89, %90 : vector<8x32xf32>
    %92 = arith.truncf %91 : vector<8x32xf32> to vector<8x32xbf16>
    %c0_32 = arith.constant 0 : index
    %c0_33 = arith.constant 0 : index
    %93 = vector.load %arg6[%c0_32, %c0_33] : memref<32x32xbf16, #tpu.memory_space<vmem>>, vector<32x32xbf16>
    %cst_34 = arith.constant dense<0.000000e+00> : vector<8x32xf32>
    %94 = tpu.matmul %92, %93, %cst_34 {dimension_numbers = #tpu.dot_dimension_numbers<[1], [0], [0], [1], [0, 0, 1, 1], [], []>} : vector<8x32xbf16>, vector<32x32xbf16>, vector<8x32xf32> -> vector<8x32xf32>
    %c0_35 = arith.constant 0 : index
    %c0_36 = arith.constant 0 : index
    %95 = vector.load %arg7[%c0_35, %c0_36] : memref<1x32xf32, #tpu.memory_space<vmem>>, vector<1x32xf32>
    %96 = vector.broadcast %95 : vector<1x32xf32> to vector<8x32xf32>
    %97 = arith.addf %94, %96 : vector<8x32xf32>
    %cst_37 = arith.constant 0.000000e+00 : f32
    %98 = vector.broadcast %cst_37 : f32 to vector<8x32xf32>
    %99 = arith.maximumf %97, %98 : vector<8x32xf32>
    %100 = arith.addf %91, %99 : vector<8x32xf32>
    %c0_38 = arith.constant 0 : index
    %c0_39 = arith.constant 0 : index
    %101 = vector.load %arg8[%c0_38, %c0_39] : memref<8x32xf32, #tpu.memory_space<vmem>>, vector<8x32xf32>
    tpu.vector_store %arg8[%c0_38, %c0_39], %100 {strides = array<i32>} : memref<8x32xf32, #tpu.memory_space<vmem>>, vector<8x32xf32>,
    return
  }
  func.func @transform_0(%arg0: i32) -> (i32, i32) {
    %c0_i32 = arith.constant 0 : i32
    %c0_i32_0 = arith.constant 0 : i32
    %c0_i32_1 = arith.constant 0 : i32
    return %c0_i32, %c0_i32_0 : i32, i32
  }
  func.func @transform_1(%arg0: i32) -> (i32, i32) {
    %c0_i32 = arith.constant 0 : i32
    %c0_i32_0 = arith.constant 0 : i32
    return %arg0, %c0_i32 : i32, i32
  }
  func.func @transform_2(%arg0: i32) -> (i32, i32) {
    %c0_i32 = arith.constant 0 : i32
    %c0_i32_0 = arith.constant 0 : i32
    %c0_i32_1 = arith.constant 0 : i32
    return %c0_i32, %c0_i32_0 : i32, i32
  }
  func.func @transform_3(%arg0: i32) -> (i32, i32) {
    %c0_i32 = arith.constant 0 : i32
    %c0_i32_0 = arith.constant 0 : i32
    %c0_i32_1 = arith.constant 0 : i32
    return %c0_i32, %c0_i32_0 : i32, i32
  }
  func.func @transform_4(%arg0: i32) -> (i32, i32) {
    %c0_i32 = arith.constant 0 : i32
    %c0_i32_0 = arith.constant 0 : i32
    %c0_i32_1 = arith.constant 0 : i32
    return %c0_i32, %c0_i32_0 : i32, i32
  }
  func.func @transform_5(%arg0: i32) -> (i32, i32) {
    %c0_i32 = arith.constant 0 : i32
    %c0_i32_0 = arith.constant 0 : i32
    %c0_i32_1 = arith.constant 0 : i32
    return %c0_i32, %c0_i32_0 : i32, i32
  }
  func.func @transform_6(%arg0: i32) -> (i32, i32) {
    %c0_i32 = arith.constant 0 : i32
    %c0_i32_0 = arith.constant 0 : i32
    %c0_i32_1 = arith.constant 0 : i32
    return %c0_i32, %c0_i32_0 : i32, i32
  }
  func.func @transform_7(%arg0: i32) -> (i32, i32) {
    %c0_i32 = arith.constant 0 : i32
    %c0_i32_0 = arith.constant 0 : i32
    return %arg0, %c0_i32 : i32, i32
  }
}

</mosaic_0001>

<llo_original>
// kernel: tpu_custom_call.1
$region0: #{tpu_custom_call.1}
  #allocation0 [shape = 'u32[]', space=smem, size = 0x4, offset = 0x4, fixed_abs, tag = 'smem constant byte address 0x4 - core index']
  #allocation1 [shape = 'u32[72,128]{1,0:T(1,128)}', space=vmem, size = 0x9000, scoped, tag = 'internal scratch']
  #allocation2 [shape = 'f32[8,32]{1,0:T(8,128)}', space=vmem, size = 0x1000, scoped, tag = 'scratch operand']
  %s0 = inlined_call_operand.hbm [shape: bf16[8,32], index: 0, kind: input, shape index: {}]
  %s1 = inlined_call_operand.hbm [shape: bf16[32,32], index: 1, kind: input, shape index: {}]
  %s2 = inlined_call_operand.hbm [shape: bf16[8,16], index: 2, kind: input, shape index: {}]
  %s3 = inlined_call_operand.hbm [shape: bf16[32,64], index: 3, kind: input, shape index: {}]
  %s4 = inlined_call_operand.vmem [shape: f32[1,64], index: 4, kind: input, shape index: {}]
  %s5 = inlined_call_operand.hbm [shape: bf16[32,32], index: 5, kind: input, shape index: {}]
  %s6 = inlined_call_operand.vmem [shape: f32[1,32], index: 6, kind: input, shape index: {}]
  %s7 = inlined_call_operand.hbm [shape: f32[16,32], index: 7, kind: output, shape index: {}]
  %s8 = sld [smem:[#allocation0]]
  $region81: #{tpu_custom_call.1} parent=0
    _
  %s10 = ssub.s32 1, %s8
  %s11 = scalar_select 0, %s10, %s8
  $region1: #{tpu_custom_call.1} parent=0
    #allocation3 [shape = 'u8[2048]{0}', space=vmem, size = 0x800, scoped, tag = 'input window, operand 0, single buffered']
    #allocation4 [shape = 's32[2]{0}', space=sflag, size = 0x8, scoped, tag = 'scoped memory for tpu_custom_call.1']
    #allocation5 [shape = 's32[2]{0}', space=sflag, size = 0x8, scoped, tag = 'scoped memory for tpu_custom_call.1']
    #allocation6 [shape = 'u8[8192]{0}', space=vmem, size = 0x2000, scoped, tag = 'input window, operand 1']
    #allocation7 [shape = 's32[2]{0}', space=sflag, size = 0x8, scoped, tag = 'scoped memory for tpu_custom_call.1']
    #allocation8 [shape = 'u8[2048]{0}', space=vmem, size = 0x800, scoped, tag = 'input window, operand 2, single buffered']
    #allocation9 [shape = 'u8[8192]{0}', space=vmem, size = 0x2000, scoped, tag = 'input window, operand 3, single buffered']
    #allocation10 [shape = 's32[1]{0}', space=sflag, size = 0x4, scoped, tag = 'scoped memory for tpu_custom_call.1']
    #allocation11 [shape = 'u8[8192]{0}', space=vmem, size = 0x2000, scoped, tag = 'input window, operand 5, single buffered']
    #allocation12 [shape = 'u8[8192]{0}', space=vmem, size = 0x2000, scoped, tag = 'output window, operand 0']
    %12 = vsyncpa [#allocation4], 0
    %13 = vsyncpa [#allocation7], 0
    %s14 = scalar_lea.sflag [#allocation7], 1
    %15 = vsyncpa %s14, 0
    %16 = vsyncpa [#allocation10], 0
    %17 = vsyncpa [#allocation5], 0
    %s18 = scalar_lea.sflag [#allocation5], 1
    %19 = vsyncpa %s18, 0
    loop: start=0, step=1, limit=4
    $region2: #{tpu_custom_call.1} parent=1 // loop_pre_header
      _
    $region3: #{tpu_custom_call.1} parent=1 // loop_header
      %s21 = sphi 0, %s25
      %p22 = scmp.ge.s32.totalorder %s21, 4
      %s29 = sphi 0, %s29
      %s31 = sphi 0, %s29
      %s32 = sphi 0, %s31
      %s46 = sphi 0, %s32
      %s52 = sphi 0, %s54
      %s55 = sphi 0, %s52
      %s56 = sphi 0, %s55
      %s72 = sphi 0, %s56
      %s76 = sphi 0, %s76
      %s78 = sphi 0, %s76
      %s79 = sphi 0, %s78
      %s93 = sphi 0, %s79
      %s97 = sphi 0, %s97
      %s99 = sphi 0, %s97
      %s100 = sphi 0, %s99
      %s114 = sphi 0, %s100
      %s118 = sphi 0, %s118
      %s120 = sphi 0, %s118
      %s121 = sphi 0, %s120
      %s135 = sphi 0, %s121
      %s139 = sphi 0, %s139
      %s141 = sphi 0, %s139
      %s142 = sphi 0, %s141
      %s156 = sphi 0, %s142
      %s160 = sphi 0, %s160
      %s162 = sphi 0, %s160
      %s163 = sphi 0, %s162
      %s177 = sphi 0, %s163
      %s183 = sphi 0, %s185
      %s186 = sphi 0, %s183
      %s187 = sphi 0, %s186
      %s203 = sphi 0, %s187
    $region4: #{tpu_custom_call.1} parent=1 // loop_header_branch
      %24 = sbr.rel (%p22) target = $region8
    $region5: #{tpu_custom_call.1} parent=1 // loop_body
      %s26 = ssub.s32 %s21, 1
      %s27 = ssub.s32 %s21, 2
      %s28 = sadd.s32 %s21, 1
      %s30 = sadd.s32 %s29, 1
      %p33 = scmp.eq.s32.totalorder %s21, 1
      %p34 = scmp.ne.s32.totalorder %s29, %s31
      %p35 = scmp.eq.s32.totalorder %s21, 0
      %p36 = por %p34, %p35
      %p37 = scmp.ne.s32.totalorder %s29, %s31
      %p38 = scmp.eq.s32.totalorder %s26, 1
      %p39 = por %p37, %p38
      %p40 = scmp.ne.s32.totalorder %s31, %s32
      %p41 = scmp.eq.s32.totalorder %s26, 0
      %p42 = por %p40, %p41
      %p43 = scmp.ne.s32.totalorder %s31, %s32
      %p44 = scmp.eq.s32.totalorder %s27, 1
      %p45 = por %p43, %p44
      %p47 = scmp.ne.s32.totalorder %s32, %s46
      %p48 = scmp.eq.s32.totalorder %s27, 0
      %p49 = por %p47, %p48
      %s50 = ssub.s32 %s21, %s28
      %p51 = scmp.eq.s32.totalorder %s50, 0
      %s53 = sadd.s32 %s52, 1
      %s54 = scalar_select %p51, %s52, %s53
      %p57 = pneg %p51
      %p58 = scmp.eq.s32.totalorder %s21, 1
      %p59 = por %p57, %p58
      %p60 = scmp.ne.s32.totalorder %s52, %s55
      %p61 = scmp.eq.s32.totalorder %s21, 0
      %p62 = por %p60, %p61
      %p63 = scmp.ne.s32.totalorder %s52, %s55
      %p64 = scmp.eq.s32.totalorder %s26, 1
      %p65 = por %p63, %p64
      %p66 = scmp.ne.s32.totalorder %s55, %s56
      %p67 = scmp.eq.s32.totalorder %s26, 0
      %p68 = por %p66, %p67
      %p69 = scmp.ne.s32.totalorder %s55, %s56
      %p70 = scmp.eq.s32.totalorder %s27, 1
      %p71 = por %p69, %p70
      %p73 = scmp.ne.s32.totalorder %s56, %s72
      %p74 = scmp.eq.s32.totalorder %s27, 0
      %p75 = por %p73, %p74
      %s77 = sadd.s32 %s76, 1
      %p80 = scmp.eq.s32.totalorder %s21, 1
      %p81 = scmp.ne.s32.totalorder %s76, %s78
      %p82 = scmp.eq.s32.totalorder %s21, 0
      %p83 = por %p81, %p82
      %p84 = scmp.ne.s32.totalorder %s76, %s78
      %p85 = scmp.eq.s32.totalorder %s26, 1
      %p86 = por %p84, %p85
      %p87 = scmp.ne.s32.totalorder %s78, %s79
      %p88 = scmp.eq.s32.totalorder %s26, 0
      %p89 = por %p87, %p88
      %p90 = scmp.ne.s32.totalorder %s78, %s79
      %p91 = scmp.eq.s32.totalorder %s27, 1
      %p92 = por %p90, %p91
      %p94 = scmp.ne.s32.totalorder %s79, %s93
      %p95 = scmp.eq.s32.totalorder %s27, 0
      %p96 = por %p94, %p95
      %s98 = sadd.s32 %s97, 1
      %p101 = scmp.eq.s32.totalorder %s21, 1
      %p102 = scmp.ne.s32.totalorder %s97, %s99
      %p103 = scmp.eq.s32.totalorder %s21, 0
      %p104 = por %p102, %p103
      %p105 = scmp.ne.s32.totalorder %s97, %s99
      %p106 = scmp.eq.s32.totalorder %s26, 1
      %p107 = por %p105, %p106
      %p108 = scmp.ne.s32.totalorder %s99, %s100
      %p109 = scmp.eq.s32.totalorder %s26, 0
      %p110 = por %p108, %p109
      %p111 = scmp.ne.s32.totalorder %s99, %s100
      %p112 = scmp.eq.s32.totalorder %s27, 1
      %p113 = por %p111, %p112
      %p115 = scmp.ne.s32.totalorder %s100, %s114
      %p116 = scmp.eq.s32.totalorder %s27, 0
      %p117 = por %p115, %p116
      %s119 = sadd.s32 %s118, 1
      %p122 = scmp.eq.s32.totalorder %s21, 1
      %p123 = scmp.ne.s32.totalorder %s118, %s120
      %p124 = scmp.eq.s32.totalorder %s21, 0
      %p125 = por %p123, %p124
      %p126 = scmp.ne.s32.totalorder %s118, %s120
      %p127 = scmp.eq.s32.totalorder %s26, 1
      %p128 = por %p126, %p127
      %p129 = scmp.ne.s32.totalorder %s120, %s121
      %p130 = scmp.eq.s32.totalorder %s26, 0
      %p131 = por %p129, %p130
      %p132 = scmp.ne.s32.totalorder %s120, %s121
      %p133 = scmp.eq.s32.totalorder %s27, 1
      %p134 = por %p132, %p133
      %p136 = scmp.ne.s32.totalorder %s121, %s135
      %p137 = scmp.eq.s32.totalorder %s27, 0
      %p138 = por %p136, %p137
      %s140 = sadd.s32 %s139, 1
      %p143 = scmp.eq.s32.totalorder %s21, 1
      %p144 = scmp.ne.s32.totalorder %s139, %s141
      %p145 = scmp.eq.s32.totalorder %s21, 0
      %p146 = por %p144, %p145
      %p147 = scmp.ne.s32.totalorder %s139, %s141
      %p148 = scmp.eq.s32.totalorder %s26, 1
      %p149 = por %p147, %p148
      %p150 = scmp.ne.s32.totalorder %s141, %s142
      %p151 = scmp.eq.s32.totalorder %s26, 0
      %p152 = por %p150, %p151
      %p153 = scmp.ne.s32.totalorder %s141, %s142
      %p154 = scmp.eq.s32.totalorder %s27, 1
      %p155 = por %p153, %p154
      %p157 = scmp.ne.s32.totalorder %s142, %s156
      %p158 = scmp.eq.s32.totalorder %s27, 0
      %p159 = por %p157, %p158
      %s161 = sadd.s32 %s160, 1
      %p164 = scmp.eq.s32.totalorder %s21, 1
      %p165 = scmp.ne.s32.totalorder %s160, %s162
      %p166 = scmp.eq.s32.totalorder %s21, 0
      %p167 = por %p165, %p166
      %p168 = scmp.ne.s32.totalorder %s160, %s162
      %p169 = scmp.eq.s32.totalorder %s26, 1
      %p170 = por %p168, %p169
      %p171 = scmp.ne.s32.totalorder %s162, %s163
      %p172 = scmp.eq.s32.totalorder %s26, 0
      %p173 = por %p171, %p172
      %p174 = scmp.ne.s32.totalorder %s162, %s163
      %p175 = scmp.eq.s32.totalorder %s27, 1
      %p176 = por %p174, %p175
      %p178 = scmp.ne.s32.totalorder %s163, %s177
      %p179 = scmp.eq.s32.totalorder %s27, 0
      %p180 = por %p178, %p179
      %s181 = ssub.s32 %s21, %s28
      %p182 = scmp.eq.s32.totalorder %s181, 0
      %s184 = sadd.s32 %s183, 1
      %s185 = scalar_select %p182, %s183, %s184
      %p188 = pneg %p182
      %p189 = scmp.eq.s32.totalorder %s21, 1
      %p190 = por %p188, %p189
      %p191 = scmp.ne.s32.totalorder %s183, %s186
      %p192 = scmp.eq.s32.totalorder %s21, 0
      %p193 = por %p191, %p192
      %p194 = scmp.ne.s32.totalorder %s183, %s186
      %p195 = scmp.eq.s32.totalorder %s26, 1
      %p196 = por %p194, %p195
      %p197 = scmp.ne.s32.totalorder %s186, %s187
      %p198 = scmp.eq.s32.totalorder %s26, 0
      %p199 = por %p197, %p198
      %p200 = scmp.ne.s32.totalorder %s186, %s187
      %p201 = scmp.eq.s32.totalorder %s27, 1
      %p202 = por %p200, %p201
      %p204 = scmp.ne.s32.totalorder %s187, %s203
      %p205 = scmp.eq.s32.totalorder %s27, 0
      %p206 = por %p204, %p205
      %p207 = scmp.le.s32.totalorder 1, %s21
      %p208 = scmp.lt.s32.totalorder %s21, 3
      %p209 = pnand %p207, %p208
      %p210 = pneg %p209
      // Predicated region
      $region9: #{tpu_custom_call.1} parent=5 // pred_check
        _
      $region10: #{tpu_custom_call.1} parent=5 // pred_check_branch
        %212 = sbr.rel (%p209) target = $region12
      $region11: #{tpu_custom_call.1} parent=5 // pred_region
        %s213 = ssub.s32 %s21, 1
        // Predicated region
        $region13: #{tpu_custom_call.1} parent=11 // pred_check
          %p214 = pneg %p42
        $region14: #{tpu_custom_call.1} parent=11 // pred_check_branch
          %216 = sbr.rel (%p214) target = $region16
        $region15: #{tpu_custom_call.1} parent=11 // pred_region
          %218 = vsyncadd [#allocation4], 0
          %s220 = sshll.u32 %s0, 4
          %s221 = int_to_ptr.hbm [resolvable:$true] %s220
          %s222 = sshll.u32 [#allocation3], 4
          %s223 = int_to_ptr.vmem [resolvable:$true] %s222
          %225 = dma.hbm_to_vmem [thread:$0]  %s221, 64, %s223, [#allocation4]
        $region16: #{tpu_custom_call.1} parent=11 // pred_fallthru
          _
        // Predicated region
        $region17: #{tpu_custom_call.1} parent=11 // pred_check
          %p226 = pneg %p89
        $region18: #{tpu_custom_call.1} parent=11 // pred_check_branch
          %228 = sbr.rel (%p226) target = $region20
        $region19: #{tpu_custom_call.1} parent=11 // pred_region
          %230 = vsyncadd [#allocation7], 0
          %s232 = sshll.u32 %s2, 4
          %s233 = int_to_ptr.hbm [resolvable:$true] %s232
          %s234 = sshll.u32 [#allocation8], 4
          %s235 = int_to_ptr.vmem [resolvable:$true] %s234
          %237 = dma.hbm_to_vmem [thread:$0]  %s233, 64, %s235, [#allocation7]
        $region20: #{tpu_custom_call.1} parent=11 // pred_fallthru
          _
        // Predicated region
        $region21: #{tpu_custom_call.1} parent=11 // pred_check
          %p238 = pneg %p110
        $region22: #{tpu_custom_call.1} parent=11 // pred_check_branch
          %240 = sbr.rel (%p238) target = $region24
        $region23: #{tpu_custom_call.1} parent=11 // pred_region
          %242 = vsyncadd [#allocation10], 0
          %s243 = sshll.u32 %s3, 4
          %s244 = int_to_ptr.hbm [resolvable:$true] %s243
          %s245 = sshll.u32 [#allocation9], 4
          %s246 = int_to_ptr.vmem [resolvable:$true] %s245
          %251 = dma.hbm_to_vmem [thread:$0]  %s244, 256, %s246, [#allocation10], 64, 64, 4
        $region24: #{tpu_custom_call.1} parent=11 // pred_fallthru
          _
        // Predicated region
        $region25: #{tpu_custom_call.1} parent=11 // pred_check
          %p252 = pneg %p131
        $region26: #{tpu_custom_call.1} parent=11 // pred_check_branch
          %254 = sbr.rel (%p252) target = $region28
        $region27: #{tpu_custom_call.1} parent=11 // pred_region
          _
        $region28: #{tpu_custom_call.1} parent=11 // pred_fallthru
          _
        // Predicated region
        $region29: #{tpu_custom_call.1} parent=11 // pred_check
          %p255 = pneg %p152
        $region30: #{tpu_custom_call.1} parent=11 // pred_check_branch
          %257 = sbr.rel (%p255) target = $region32
        $region31: #{tpu_custom_call.1} parent=11 // pred_region
          %259 = vsyncadd [#allocation10], 0
          %s260 = sshll.u32 %s5, 4
          %s261 = int_to_ptr.hbm [resolvable:$true] %s260
          %s262 = sshll.u32 [#allocation11], 4
          %s263 = int_to_ptr.vmem [resolvable:$true] %s262
          %268 = dma.hbm_to_vmem [thread:$0]  %s261, 256, %s263, [#allocation10], 64, 64, 4
        $region32: #{tpu_custom_call.1} parent=11 // pred_fallthru
          _
        // Predicated region
        $region33: #{tpu_custom_call.1} parent=11 // pred_check
          %p269 = pneg %p173
        $region34: #{tpu_custom_call.1} parent=11 // pred_check_branch
          %271 = sbr.rel (%p269) target = $region36
        $region35: #{tpu_custom_call.1} parent=11 // pred_region
          _
        $region36: #{tpu_custom_call.1} parent=11 // pred_fallthru
          _
      $region12: #{tpu_custom_call.1} parent=5 // pred_fallthru
        _
      %p272 = scmp.lt.s32.totalorder %s21, 2
      // Predicated region
      $region37: #{tpu_custom_call.1} parent=5 // pred_check
        %p273 = pneg %p272
      $region38: #{tpu_custom_call.1} parent=5 // pred_check_branch
        %275 = sbr.rel (%p273) target = $region40
      $region39: #{tpu_custom_call.1} parent=5 // pred_region
        // Predicated region
        $region41: #{tpu_custom_call.1} parent=39 // pred_check
          %p276 = pneg %p62
        $region42: #{tpu_custom_call.1} parent=39 // pred_check_branch
          %278 = sbr.rel (%p276) target = $region44
        $region43: #{tpu_custom_call.1} parent=39 // pred_region
          %s279 = sand.u32 %s21, 1
          %s280 = scalar_lea.sflag [#allocation7], %s279
          %s281 = sand.u32 %s52, 1
          %s282 = smul.addr %s281, 8
          %s283 = scalar_lea.vmem [#allocation6], %s282
          %s284 = smul.u32 2, %s21
          %286 = vsyncadd %s280, 0
          %s287 = smul.addr %s284, 4
          %s288 = scalar_lea.hbm %s1, %s287
          %s289 = sshll.u32 %s288, 4
          %s290 = int_to_ptr.hbm [resolvable:$true] %s289
          %s291 = sshll.u32 %s283, 4
          %s292 = int_to_ptr.vmem [resolvable:$true] %s291
          %297 = dma.hbm_to_vmem [thread:$0]  %s290, 128, %s292, %s280, 64, 64, 4
        $region44: #{tpu_custom_call.1} parent=39 // pred_fallthru
          _
      $region40: #{tpu_custom_call.1} parent=5 // pred_fallthru
        _
      %p298 = scmp.le.s32.totalorder 1, %s21
      %p299 = scmp.lt.s32.totalorder %s21, 3
      %p300 = pnand %p298, %p299
      %p301 = pneg %p300
      // Predicated region
      $region45: #{tpu_custom_call.1} parent=5 // pred_check
        _
      $region46: #{tpu_custom_call.1} parent=5 // pred_check_branch
        %303 = sbr.rel (%p300) target = $region48
      $region47: #{tpu_custom_call.1} parent=5 // pred_region
        %s304 = ssub.s32 %s21, 1
        // Predicated region
        $region49: #{tpu_custom_call.1} parent=47 // pred_check
          %p305 = pneg %p42
        $region50: #{tpu_custom_call.1} parent=47 // pred_check_branch
          %307 = sbr.rel (%p305) target = $region52
        $region51: #{tpu_custom_call.1} parent=47 // pred_region
          %309 = dma.done [#allocation4], 64
        $region52: #{tpu_custom_call.1} parent=47 // pred_fallthru
          _
        %s310 = sand.u32 %s26, 1
        %s311 = scalar_lea.sflag [#allocation7], %s310
        %s312 = sand.u32 %s55, 1
        %s313 = smul.addr %s312, 8
        %s314 = scalar_lea.vmem [#allocation6], %s313
        // Predicated region
        $region53: #{tpu_custom_call.1} parent=47 // pred_check
          %p315 = pneg %p68
        $region54: #{tpu_custom_call.1} parent=47 // pred_check_branch
          %317 = sbr.rel (%p315) target = $region56
        $region55: #{tpu_custom_call.1} parent=47 // pred_region
          %319 = dma.done %s311, 128
        $region56: #{tpu_custom_call.1} parent=47 // pred_fallthru
          _
        // Predicated region
        $region57: #{tpu_custom_call.1} parent=47 // pred_check
          %p320 = pneg %p89
        $region58: #{tpu_custom_call.1} parent=47 // pred_check_branch
          %322 = sbr.rel (%p320) target = $region60
        $region59: #{tpu_custom_call.1} parent=47 // pred_region
          %324 = dma.done [#allocation7], 64
        $region60: #{tpu_custom_call.1} parent=47 // pred_fallthru
          _
        // Predicated region
        $region61: #{tpu_custom_call.1} parent=47 // pred_check
          %p325 = pneg %p110
        $region62: #{tpu_custom_call.1} parent=47 // pred_check_branch
          %327 = sbr.rel (%p325) target = $region64
        $region63: #{tpu_custom_call.1} parent=47 // pred_region
          %329 = dma.done [#allocation10], 256
        $region64: #{tpu_custom_call.1} parent=47 // pred_fallthru
          _
        // Predicated region
        $region65: #{tpu_custom_call.1} parent=47 // pred_check
          %p330 = pneg %p152
        $region66: #{tpu_custom_call.1} parent=47 // pred_check_branch
          %332 = sbr.rel (%p330) target = $region68
        $region67: #{tpu_custom_call.1} parent=47 // pred_region
          %334 = dma.done [#allocation10], 256
        $region68: #{tpu_custom_call.1} parent=47 // pred_fallthru
          _
        %p335 = pneg %p42
        %p336 = pneg %p39
        %s337 = sand.u32 %s26, 1
        %s338 = scalar_lea.sflag [#allocation7], %s337
        %s339 = sand.u32 %s55, 1
        %s340 = smul.addr %s339, 8
        %s341 = scalar_lea.vmem [#allocation6], %s340
        %p342 = pneg %p68
        %p343 = pneg %p65
        %p344 = pneg %p89
        %p345 = pneg %p86
        %p346 = pneg %p110
        %p347 = pneg %p107
        %p348 = pneg %p131
        %p349 = pneg %p128
        %p350 = pneg %p152
        %p351 = pneg %p149
        %p352 = pneg %p173
        %p353 = pneg %p170
        %p354 = pneg %p199
        %p355 = pneg %p196
        %s356 = sand.u32 %s186, 1
        %s357 = scalar_lea.sflag [#allocation5], %s356
        %s358 = sand.u32 %s186, 1
        %s359 = smul.addr %s358, 8
        %s360 = scalar_lea.vmem [#allocation12], %s359
        %s361 = smul.u32 2, %s26
        %v363 = vld [vmem:[%s314] sm:$0xf]
        %v364 = vld [vmem:[%s314 + $0x4] sm:$0xf]
        %v365 = vld [vmem:[#allocation9] sm:$0xf]
        %v366 = vld [vmem:[#allocation9 + $0x4] sm:$0xf]
        %v367 = vld [vmem:[#allocation9 + $0x8] sm:$0xf]
        %v368 = vld [vmem:[#allocation9 + $0xc] sm:$0xf]
        %v369 = vld [vmem:[%s4] sm:$0x1]
        %v371 = vperm.slane %v369, 0
        %v375 = vunpack.c.l.b16 %v363
        %v376 = vunpack.c.l.b16 %v364
        %v377 = vpack.c.b16 %v376, %v375
        %v382 = vunpack.c.l.b16 %v365
        %v383 = vunpack.c.l.b16 %v366
        %v384 = vunpack.c.l.b16 %v367
        %v385 = vunpack.c.l.b16 %v368
        %v386 = vpack.c.b16 %v383, %v382
        %v387 = vpack.c.b16 %v385, %v384
        %vm390 = vcmask 261120
        %v392 = vsel %vm390, %v377, 0
        %394 = vmatpush.bf16.msra.mxu0 0
        %395 = vmatpush.bf16.msra.mxu0 0
        %396 = vmatpush.bf16.msra.mxu0 0
        %397 = vmatpush.bf16.msra.mxu0 0
        %398 = vmatpush.bf16.msra.mxu0 0
        %399 = vmatpush.bf16.msra.mxu0 0
        %400 = vmatpush.bf16.msra.mxu0 %v387
        %401 = vmatpush.bf16.msra.mxu0 %v386
        %402 = vmatmul.bf16.gmra.mxu0 %v392
        %v403 = vpop.f32.mrf.mxu0
        %v404 = vadd.f32 %v371, %v403
        %v405 = vpop.f32.mrf.mxu0
        %v406 = vadd.f32 %v371, %v405
        %407 = vdwg.mxu0
        %v408 = vld [vmem:[#allocation3] sm:$0xf]
        %v409 = vld [vmem:[#allocation8] sm:$0xf]
        %v410 = vunpack.c.l.bf16 %v409
        %v411 = vpack.c.bf16 %v406, %v404
        %vm412 = vcmask 64512
        %v414 = vsel %vm412, %v408, 0
        %v417 = vsel %vm412, %v411, 0
        %419 = vmatpush.bf16.xpose.msra.mxu0 0
        %420 = vmatpush.bf16.xpose.msra.mxu0 0
        %421 = vmatpush.bf16.xpose.msra.mxu0 0
        %422 = vmatpush.bf16.xpose.msra.mxu0 0
        %423 = vmatpush.bf16.xpose.msra.mxu0 0
        %424 = vmatpush.bf16.xpose.msra.mxu0 0
        %425 = vmatpush.bf16.xpose.msra.mxu0 0
        %426 = vmatpush.bf16.xpose.msra.mxu0 %v417
        %427 = vmatmul.bf16.gmra.mxu0 %v414
        %v428 = vpop.f32.mrf.mxu0
        %v429 = vadd.f32 %v410, %v428
        %v430 = vpop.f32.mrf.mxu0
        %431 = vdwg.mxu0
        %vm432 = vcmask 130048
        %v433 = vsel %vm432, %v429, -inf
        %434 = vmax.xlane.f32.xlu0 %v433
        %v435 = vpop.xlane.xlu0 %434
        %v436 = vsub.f32 %v429, %v435
        %v437 = vmul.f32 %v436, 1.442695
        %v438 = vpow.pop %v437
        %v439 = vsel %vm432, %v438, 0.0
        %440 = vadd.xlane.f32.xlu0 %v439
        %v441 = vpop.xlane.xlu0 %440
        %v442 = vrcp.pop %v441
        %v443 = vmul.f32 %v438, %v442
        %v444 = vpack.c.bf16 %v443, %v443
        %446 = vrot.lane.b32.xlu0 %v411, 96
        %v447 = vpop.permute.xlu0 %446
        %v450 = vsel %vm432, %v444, 0
        %452 = vmatpush.bf16.msra.mxu0 0
        %453 = vmatpush.bf16.msra.mxu0 0
        %454 = vmatpush.bf16.msra.mxu0 0
        %455 = vmatpush.bf16.msra.mxu0 0
        %456 = vmatpush.bf16.msra.mxu0 0
        %457 = vmatpush.bf16.msra.mxu0 0
        %458 = vmatpush.bf16.msra.mxu0 0
        %459 = vmatpush.bf16.msra.mxu0 %v447
        %460 = vmatmul.bf16.gmra.mxu0 %v450
        %v461 = vpop.f32.mrf.mxu0
        %v462 = vadd.f32 0.0, %v461
        %v463 = vpop.f32.mrf.mxu0
        %464 = vdwg.mxu0
        %465 = vst.msk [vmem:[#allocation2] sm:$0xff] %vm412, %v462
        %v467 = vunpack.c.l.b16 %v408
        %v468 = vpack.c.b16 %v467, %v467
        %469 = vrot.lane.b32.xlu0 %v468, 120
        %v470 = vpop.permute.xlu0 %469
        %471 = vrot.lane.b32.xlu0 %v411, 120
        %v472 = vpop.permute.xlu0 %471
        %v474 = vsel %vm412, %v470, 0
        %v477 = vsel %vm412, %v472, 0
        %479 = vmatpush.bf16.xpose.msra.mxu0 0
        %480 = vmatpush.bf16.xpose.msra.mxu0 0
        %481 = vmatpush.bf16.xpose.msra.mxu0 0
        %482 = vmatpush.bf16.xpose.msra.mxu0 0
        %483 = vmatpush.bf16.xpose.msra.mxu0 0
        %484 = vmatpush.bf16.xpose.msra.mxu0 0
        %485 = vmatpush.bf16.xpose.msra.mxu0 0
        %486 = vmatpush.bf16.xpose.msra.mxu0 %v477
        %487 = vmatmul.bf16.gmra.mxu0 %v474
        %v488 = vpop.f32.mrf.mxu0
        %v489 = vadd.f32 %v410, %v488
        %v490 = vpop.f32.mrf.mxu0
        %491 = vdwg.mxu0
        %v492 = vsel %vm432, %v489, -inf
        %493 = vmax.xlane.f32.xlu0 %v492
        %v494 = vpop.xlane.xlu0 %493
        %v495 = vsub.f32 %v489, %v494
        %v496 = vmul.f32 %v495, 1.442695
        %v497 = vpow.pop %v496
        %v498 = vsel %vm432, %v497, 0.0
        %499 = vadd.xlane.f32.xlu0 %v498
        %v500 = vpop.xlane.xlu0 %499
        %v501 = vrcp.pop %v500
        %v502 = vmul.f32 %v497, %v501
        %v503 = vpack.c.bf16 %v502, %v502
        %504 = vrot.lane.b32.xlu0 %v411, 88
        %v505 = vpop.permute.xlu0 %504
        %v508 = vsel %vm432, %v503, 0
        %510 = vmatpush.bf16.msra.mxu0 0
        %511 = vmatpush.bf16.msra.mxu0 0
        %512 = vmatpush.bf16.msra.mxu0 0
        %513 = vmatpush.bf16.msra.mxu0 0
        %514 = vmatpush.bf16.msra.mxu0 0
        %515 = vmatpush.bf16.msra.mxu0 0
        %516 = vmatpush.bf16.msra.mxu0 0
        %517 = vmatpush.bf16.msra.mxu0 %v505
        %518 = vmatmul.bf16.gmra.mxu0 %v508
        %v519 = vpop.f32.mrf.mxu0
        %v520 = vadd.f32 0.0, %v519
        %v521 = vpop.f32.mrf.mxu0
        %522 = vdwg.mxu0
        %524 = vrot.lane.b32.xlu0 %v520, 8
        %v525 = vpop.permute.xlu0 %524
        %vm527 = vcmask 130112
        %528 = vst.msk [vmem:[#allocation2] sm:$0xff] %vm527, %v525
        %529 = vrot.lane.b32.xlu0 %v468, 112
        %v530 = vpop.permute.xlu0 %529
        %531 = vrot.lane.b32.xlu0 %v411, 112
        %v532 = vpop.permute.xlu0 %531
        %v534 = vsel %vm412, %v530, 0
        %v537 = vsel %vm412, %v532, 0
        %539 = vmatpush.bf16.xpose.msra.mxu0 0
        %540 = vmatpush.bf16.xpose.msra.mxu0 0
        %541 = vmatpush.bf16.xpose.msra.mxu0 0
        %542 = vmatpush.bf16.xpose.msra.mxu0 0
        %543 = vmatpush.bf16.xpose.msra.mxu0 0
        %544 = vmatpush.bf16.xpose.msra.mxu0 0
        %545 = vmatpush.bf16.xpose.msra.mxu0 0
        %546 = vmatpush.bf16.xpose.msra.mxu0 %v537
        %547 = vmatmul.bf16.gmra.mxu0 %v534
        %v548 = vpop.f32.mrf.mxu0
        %v549 = vadd.f32 %v410, %v548
        %v550 = vpop.f32.mrf.mxu0
        %551 = vdwg.mxu0
        %v552 = vsel %vm432, %v549, -inf
        %553 = vmax.xlane.f32.xlu0 %v552
        %v554 = vpop.xlane.xlu0 %553
        %v555 = vsub.f32 %v549, %v554
        %v556 = vmul.f32 %v555, 1.442695
        %v557 = vpow.pop %v556
        %v558 = vsel %vm432, %v557, 0.0
        %559 = vadd.xlane.f32.xlu0 %v558
        %v560 = vpop.xlane.xlu0 %559
        %v561 = vrcp.pop %v560
        %v562 = vmul.f32 %v557, %v561
        %v563 = vpack.c.bf16 %v562, %v562
        %564 = vrot.lane.b32.xlu0 %v411, 80
        %v565 = vpop.permute.xlu0 %564
        %v568 = vsel %vm432, %v563, 0
        %570 = vmatpush.bf16.msra.mxu0 0
        %571 = vmatpush.bf16.msra.mxu0 0
        %572 = vmatpush.bf16.msra.mxu0 0
        %573 = vmatpush.bf16.msra.mxu0 0
        %574 = vmatpush.bf16.msra.mxu0 0
        %575 = vmatpush.bf16.msra.mxu0 0
        %576 = vmatpush.bf16.msra.mxu0 0
        %577 = vmatpush.bf16.msra.mxu0 %v565
        %578 = vmatmul.bf16.gmra.mxu0 %v568
        %v579 = vpop.f32.mrf.mxu0
        %v580 = vadd.f32 0.0, %v579
        %v581 = vpop.f32.mrf.mxu0
        %582 = vdwg.mxu0
        %584 = vrot.lane.b32.xlu0 %v580, 16
        %v585 = vpop.permute.xlu0 %584
        %vm587 = vcmask 195712
        %588 = vst.msk [vmem:[#allocation2] sm:$0xff] %vm587, %v585
        %589 = vrot.lane.b32.xlu0 %v468, 104
        %v590 = vpop.permute.xlu0 %589
        %591 = vrot.lane.b32.xlu0 %v411, 104
        %v592 = vpop.permute.xlu0 %591
        %v594 = vsel %vm412, %v590, 0
        %v597 = vsel %vm412, %v592, 0
        %599 = vmatpush.bf16.xpose.msra.mxu0 0
        %600 = vmatpush.bf16.xpose.msra.mxu0 0
        %601 = vmatpush.bf16.xpose.msra.mxu0 0
        %602 = vmatpush.bf16.xpose.msra.mxu0 0
        %603 = vmatpush.bf16.xpose.msra.mxu0 0
        %604 = vmatpush.bf16.xpose.msra.mxu0 0
        %605 = vmatpush.bf16.xpose.msra.mxu0 0
        %606 = vmatpush.bf16.xpose.msra.mxu0 %v597
        %607 = vmatmul.bf16.gmra.mxu0 %v594
        %v608 = vpop.f32.mrf.mxu0
        %v609 = vadd.f32 %v410, %v608
        %v610 = vpop.f32.mrf.mxu0
        %611 = vdwg.mxu0
        %v612 = vsel %vm432, %v609, -inf
        %613 = vmax.xlane.f32.xlu0 %v612
        %v614 = vpop.xlane.xlu0 %613
        %v615 = vsub.f32 %v609, %v614
        %v616 = vmul.f32 %v615, 1.442695
        %v617 = vpow.pop %v616
        %v618 = vsel %vm432, %v617, 0.0
        %619 = vadd.xlane.f32.xlu0 %v618
        %v620 = vpop.xlane.xlu0 %619
        %v621 = vrcp.pop %v620
        %v622 = vmul.f32 %v617, %v621
        %v623 = vpack.c.bf16 %v622, %v622
        %624 = vrot.lane.b32.xlu0 %v411, 72
        %v625 = vpop.permute.xlu0 %624
        %v628 = vsel %vm432, %v623, 0
        %630 = vmatpush.bf16.msra.mxu0 0
        %631 = vmatpush.bf16.msra.mxu0 0
        %632 = vmatpush.bf16.msra.mxu0 0
        %633 = vmatpush.bf16.msra.mxu0 0
        %634 = vmatpush.bf16.msra.mxu0 0
        %635 = vmatpush.bf16.msra.mxu0 0
        %636 = vmatpush.bf16.msra.mxu0 0
        %637 = vmatpush.bf16.msra.mxu0 %v625
        %638 = vmatmul.bf16.gmra.mxu0 %v628
        %v639 = vpop.f32.mrf.mxu0
        %v640 = vadd.f32 0.0, %v639
        %v641 = vpop.f32.mrf.mxu0
        %642 = vdwg.mxu0
        %644 = vrot.lane.b32.xlu0 %v640, 24
        %v645 = vpop.permute.xlu0 %644
        %vm647 = vcmask 261312
        %648 = vst.msk [vmem:[#allocation2] sm:$0xff] %vm647, %v645
        %v649 = vunpack.c.l.bf16 %v408
        %v650 = vld [vmem:[#allocation2] sm:$0xff]
        %v651 = vadd.f32 %v649, %v650
        %v652 = vpack.c.bf16 %v651, %v651
        %v653 = vld [vmem:[#allocation11] sm:$0xf]
        %v654 = vld [vmem:[#allocation11 + $0x4] sm:$0xf]
        %v655 = vld [vmem:[#allocation11 + $0x8] sm:$0xf]
        %v656 = vld [vmem:[#allocation11 + $0xc] sm:$0xf]
        %v657 = vld [vmem:[%s6] sm:$0x1]
        %v659 = vperm.slane %v657, 0
        %v665 = vunpack.c.l.b16 %v653
        %v666 = vunpack.c.l.b16 %v654
        %v667 = vunpack.c.l.b16 %v655
        %v668 = vunpack.c.l.b16 %v656
        %v669 = vpack.c.b16 %v666, %v665
        %v670 = vpack.c.b16 %v668, %v667
        %v674 = vsel %vm390, %v652, 0
        %676 = vmatpush.bf16.msra.mxu0 0
        %677 = vmatpush.bf16.msra.mxu0 0
        %678 = vmatpush.bf16.msra.mxu0 0
        %679 = vmatpush.bf16.msra.mxu0 0
        %680 = vmatpush.bf16.msra.mxu0 0
        %681 = vmatpush.bf16.msra.mxu0 0
        %682 = vmatpush.bf16.msra.mxu0 %v670
        %683 = vmatpush.bf16.msra.mxu0 %v669
        %684 = vmatmul.bf16.gmra.mxu0 %v674
        %v685 = vpop.f32.mrf.mxu0
        %v686 = vadd.f32 %v659, %v685
        %v687 = vpop.f32.mrf.mxu0
        %688 = vdwg.mxu0
        %v689 = vmax.f32 %v686, 0.0
        %v690 = vadd.f32 %v651, %v689
        %691 = vst.msk [vmem:[%s360] sm:$0xff] %vm390, %v690
        %s692 = sand.u32 %s186, 1
        %s693 = scalar_lea.sflag [#allocation5], %s692
        %s694 = sand.u32 %s186, 1
        %s695 = smul.addr %s694, 8
        %s696 = scalar_lea.vmem [#allocation12], %s695
        // Predicated region
        $region69: #{tpu_custom_call.1} parent=47 // pred_check
          %p697 = pneg %p196
        $region70: #{tpu_custom_call.1} parent=47 // pred_check_branch
          %699 = sbr.rel (%p697) target = $region72
        $region71: #{tpu_custom_call.1} parent=47 // pred_region
          %701 = vsyncadd %s693, 0
          %s702 = smul.addr %s26, 8
          %s703 = scalar_lea.hbm %s7, %s702
          %s705 = sshll.u32 %s696, 4
          %s706 = int_to_ptr.vmem [resolvable:$true] %s705
          %s707 = sshll.u32 %s703, 4
          %s708 = int_to_ptr.hbm [resolvable:$true] %s707
          %710 = dma.vmem_to_hbm [thread:$0]  %s706, 128, %s708, %s693
        $region72: #{tpu_custom_call.1} parent=47 // pred_fallthru
          _
      $region48: #{tpu_custom_call.1} parent=5 // pred_fallthru
        _
      %p711 = scmp.le.s32.totalorder 2, %s21
      // Predicated region
      $region73: #{tpu_custom_call.1} parent=5 // pred_check
        %p712 = pneg %p711
      $region74: #{tpu_custom_call.1} parent=5 // pred_check_branch
        %714 = sbr.rel (%p712) target = $region76
      $region75: #{tpu_custom_call.1} parent=5 // pred_region
        %s715 = ssub.s32 %s21, 2
        // Predicated region
        $region77: #{tpu_custom_call.1} parent=75 // pred_check
          %p716 = pneg %p202
        $region78: #{tpu_custom_call.1} parent=75 // pred_check_branch
          %718 = sbr.rel (%p716) target = $region80
        $region79: #{tpu_custom_call.1} parent=75 // pred_region
          %s719 = sand.u32 %s187, 1
          %s720 = scalar_lea.sflag [#allocation5], %s719
          %s721 = sand.u32 %s187, 1
          %s722 = smul.addr %s721, 8
          %s723 = scalar_lea.vmem [#allocation12], %s722
          %725 = dma.done %s720, 128
        $region80: #{tpu_custom_call.1} parent=75 // pred_fallthru
          _
      $region76: #{tpu_custom_call.1} parent=5 // pred_fallthru
        _
    $region6: #{tpu_custom_call.1} parent=1 // loop_footer
      %s25 = sadd.s32 1, %s21
    $region7: #{tpu_custom_call.1} parent=1 // loop_footer_branch
      %20 = sbr.rel target = $region3
    $region8: #{tpu_custom_call.1} parent=1 // loop_exit
      _
    %726 = vsyncpa [#allocation4], 1
    %s727 = scalar_lea.sflag [#allocation4], 1
    %728 = vsyncpa %s727, 1
    %729 = vsyncpa [#allocation7], 1
    %s730 = scalar_lea.sflag [#allocation7], 1
    %731 = vsyncpa %s730, 1
    %732 = vsyncpa [#allocation10], 1
    %733 = vsyncpa [#allocation5], 1
    %s734 = scalar_lea.sflag [#allocation5], 1
    %735 = vsyncpa %s734, 1

</llo_original>
